<compile_context>
chip_gen: v7x
topology: tpu7x:2x2x1
jax: 0.10.0
libtpu: 0.0.40
codegen_flags: <defaults>
</compile_context>

<pallas_src>
import functools

import jax
import jax.numpy as jnp
from jax.experimental import pallas as pl
from jax.experimental.pallas import tpu as pltpu


def _fused_patch_merge_kernel(x_ref, g_ref, b_ref, w_ref, o_ref, *, eps):
    # x_ref: (tr, 2, W2, 2C)  contiguous rows of the half-res grid
    # g_ref, b_ref: (2, 2C)   LN affine, channel-permuted per row-parity slab
    # w_ref: (2, 2C, 2C)      reduction weight, row blocks permuted to match
    # o_ref: (tr*W2, 2C)
    tm = o_ref.shape[0]
    two_c = x_ref.shape[-1]
    n_ln = 2 * two_c                       # = 4*C, LayerNorm width

    xf = x_ref[...].astype(jnp.float32)    # (tr, 2, W2, 2C)
    xa = xf[:, 0, :, :].reshape(tm, two_c)   # channels [x0 | x2]  (even rows)
    xb = xf[:, 1, :, :].reshape(tm, two_c)   # channels [x1 | x3]  (odd rows)

    # LayerNorm statistics over the (virtually concatenated) 4C axis.
    row_sum = (jnp.sum(xa, axis=-1, keepdims=True)
               + jnp.sum(xb, axis=-1, keepdims=True))
    mean = row_sum * (1.0 / n_ln)
    da = xa - mean
    db = xb - mean
    var = (jnp.sum(da * da, axis=-1, keepdims=True)
           + jnp.sum(db * db, axis=-1, keepdims=True)) * (1.0 / n_ln)
    inv = jax.lax.rsqrt(var + eps)

    g = g_ref[...].astype(jnp.float32)
    b = b_ref[...].astype(jnp.float32)
    xna = da * inv * g[0:1, :] + b[0:1, :]
    xnb = db * inv * g[1:2, :] + b[1:2, :]

    # Reduction linear (no bias), decomposed per row-parity slab.
    acc = jnp.dot(xna, w_ref[0].astype(jnp.float32),
                  preferred_element_type=jnp.float32)
    acc = acc + jnp.dot(xnb, w_ref[1].astype(jnp.float32),
                        preferred_element_type=jnp.float32)
    o_ref[...] = acc.astype(o_ref.dtype)


def _premerged_patch_merge_kernel(x_ref, g_ref, b_ref, w_ref, o_ref, *, eps):
    # x_ref: (tm, 4C); g_ref/b_ref: (1, 4C); w_ref: (4C, 2C); o_ref: (tm, 2C)
    x = x_ref[...].astype(jnp.float32)
    n_ln = x.shape[-1]
    mean = jnp.sum(x, axis=-1, keepdims=True) * (1.0 / n_ln)
    d = x - mean
    var = jnp.sum(d * d, axis=-1, keepdims=True) * (1.0 / n_ln)
    inv = jax.lax.rsqrt(var + eps)
    xn = d * inv * g_ref[...].astype(jnp.float32) + b_ref[...].astype(jnp.float32)
    o_ref[...] = jnp.dot(xn, w_ref[...].astype(jnp.float32),
                         preferred_element_type=jnp.float32).astype(o_ref.dtype)


def _round_up(a, b):
    return ((a + b - 1) // b) * b


def patch_merging_forward(x, gamma, beta, w, input_resolution, *, eps=1e-5,
                          target_tokens_per_step=512,
                          vmem_budget_bytes=24 * 1024 * 1024):
    """Swin PatchMerging forward.

    x: (B, H*W, C); gamma/beta: (4C,) LayerNorm affine; w: (4C, 2C) reduction
    weight stored transposed vs. PyTorch, so the kernel computes LN(merged) @ w.
    Returns (B, (H//2)*(W//2), 2C) in x.dtype.
    """
    H, W = input_resolution
    B, L, C = x.shape
    assert L == H * W, "input feature has wrong size"
    assert H % 2 == 0 and W % 2 == 0, f"x size ({H}*{W}) are not even."
    H2, W2 = H // 2, W // 2
    R = B * H2                      # half-resolution image rows
    M = R * W2                      # merged tokens
    C4, C2 = 4 * C, 2 * C
    out_dtype = x.dtype

    compiler_params = pltpu.CompilerParams(
        dimension_semantics=("parallel",),
        vmem_limit_bytes=32 * 1024 * 1024,   # safe on v5e/v6e/v7x, > v5e default
    )

    # HBM traffic per merged token (input group + output), f32 worst case.
    per_token_bytes = (C4 + C2) * 4

    if W2 % 8 == 0:
        # ---------- fused path: gather happens inside the kernel ----------
        xv = x.reshape(R, 2, W2, C2)         # pure reshape -> no HBM copy

        # Channel-permute LN affine / weight so each row-parity slab
        # ([x0|x2] for even image rows, [x1|x3] for odd) gets its own chunk.
        g4 = gamma.reshape(4, C)
        b4 = beta.reshape(4, C)
        w4 = w.reshape(4, C, C2)
        gp = jnp.stack([jnp.concatenate([g4[0], g4[2]]),
                        jnp.concatenate([g4[1], g4[3]])])            # (2, 2C)
        bp = jnp.stack([jnp.concatenate([b4[0], b4[2]]),
                        jnp.concatenate([b4[1], b4[3]])])            # (2, 2C)
        wp = jnp.stack([jnp.concatenate([w4[0], w4[2]], axis=0),
                        jnp.concatenate([w4[1], w4[3]], axis=0)])    # (2, 2C, 2C)

        const_bytes = 2 * 4 * (wp.size + gp.size + bp.size)          # double-buffered
        budget = max(vmem_budget_bytes - const_bytes, 8 * per_token_bytes * W2)
        # ~6x == double-buffered I/O blocks + in-kernel f32 temporaries.
        tokens_fit = max(W2, budget // (6 * per_token_bytes))
        tr = max(1, min(R,
                        pl.cdiv(target_tokens_per_step, W2),
                        tokens_fit // W2))
        tr = min(tr, max(1, pl.cdiv(R, 2)))   # keep >=2 grid steps (megacore/pipeline)
        tm = tr * W2
        grid = (pl.cdiv(R, tr),)

        kernel = functools.partial(_fused_patch_merge_kernel, eps=eps)
        out = pl.pallas_call(
            kernel,
            out_shape=jax.ShapeDtypeStruct((M, C2), out_dtype),
            grid=grid,
            in_specs=[
                pl.BlockSpec((tr, 2, W2, C2), lambda i: (i, 0, 0, 0)),
                pl.BlockSpec((2, C2), lambda i: (0, 0)),
                pl.BlockSpec((2, C2), lambda i: (0, 0)),
                pl.BlockSpec((2, C2, C2), lambda i: (0, 0, 0)),
            ],
            out_specs=pl.BlockSpec((tm, C2), lambda i: (i, 0)),
            compiler_params=compiler_params,
        )(xv, gp, bp, wp)
    else:
        # ------ fallback: pre-merge in XLA (extra HBM round trip), big tiles ------
        # TODO(synk): fuse the gather for W//2 not divisible by 8 too (needs a
        # non-layout-preserving in-kernel reshape).
        xg = x.reshape(B, H2, 2, W2, 2, C)
        xm = jnp.concatenate(
            [xg[:, :, 0, :, 0, :], xg[:, :, 1, :, 0, :],
             xg[:, :, 0, :, 1, :], xg[:, :, 1, :, 1, :]], axis=-1).reshape(M, C4)

        const_bytes = 2 * 4 * (w.size + 2 * C4)
        budget = max(vmem_budget_bytes - const_bytes, 8 * per_token_bytes * 8)
        tokens_fit = max(8, (budget // (6 * per_token_bytes)) // 8 * 8)
        tm = min(_round_up(target_tokens_per_step, 8), _round_up(M, 8), tokens_fit)
        grid = (pl.cdiv(M, tm),)

        kernel = functools.partial(_premerged_patch_merge_kernel, eps=eps)
        out = pl.pallas_call(
            kernel,
            out_shape=jax.ShapeDtypeStruct((M, C2), out_dtype),
            grid=grid,
            in_specs=[
                pl.BlockSpec((tm, C4), lambda i: (i, 0)),
                pl.BlockSpec((1, C4), lambda i: (0, 0)),
                pl.BlockSpec((1, C4), lambda i: (0, 0)),
                pl.BlockSpec((C4, C2), lambda i: (0, 0)),
            ],
            out_specs=pl.BlockSpec((tm, C2), lambda i: (i, 0)),
            compiler_params=compiler_params,
        )(xm, gamma.reshape(1, C4), beta.reshape(1, C4), w)

    return out.reshape(B, H2 * W2, C2)


def _reference(x, gamma, beta, w, input_resolution, eps=1e-5):
    """Pure-JAX reference mirroring the PyTorch forward."""
    H, W = input_resolution
    B, L, C = x.shape
    xv = x.reshape(B, H, W, C)
    x0 = xv[:, 0::2, 0::2, :]
    x1 = xv[:, 1::2, 0::2, :]
    x2 = xv[:, 0::2, 1::2, :]
    x3 = xv[:, 1::2, 1::2, :]
    xm = jnp.concatenate([x0, x1, x2, x3], axis=-1).reshape(B, -1, 4 * C)
    mean = jnp.mean(xm, axis=-1, keepdims=True)
    var = jnp.mean((xm - mean) ** 2, axis=-1, keepdims=True)
    xn = (xm - mean) / jnp.sqrt(var + eps) * gamma + beta
    return xn @ w


if __name__ == "__main__":
    def run_case(B, H, W, dim, seed):
        key = jax.random.PRNGKey(seed)
        kx, kw, kg, kb = jax.random.split(key, 4)
        x = jax.random.normal(kx, (B, H * W, dim), dtype=jnp.float32)
        # PyTorch Linear(4*dim, 2*dim, bias=False).weight is (2*dim, 4*dim);
        # we store its transpose (4*dim, 2*dim) so the kernel computes xm @ w.
        w = (jax.random.normal(kw, (4 * dim, 2 * dim), dtype=jnp.float32)
             * (1.0 / jnp.sqrt(4.0 * dim)))
        # Non-trivial LN affine so the channel-permutation path is exercised.
        gamma = 1.0 + 0.1 * jax.random.normal(kg, (4 * dim,), dtype=jnp.float32)
        beta = 0.05 * jax.random.normal(kb, (4 * dim,), dtype=jnp.float32)

        out = jax.block_until_ready(
            patch_merging_forward(x, gamma, beta, w, (H, W)))
        ref = _reference(x, gamma, beta, w, (H, W))
        assert out.shape == (B, (H // 2) * (W // 2), 2 * dim), out.shape
        err = float(jnp.max(jnp.abs(out - ref)))
        assert err < 1e-4, f"max abs err {err}"

    run_case(2, 16, 16, 32, seed=0)   # fused path   (W//2 = 8, multiple of 8)
    run_case(2, 12, 12, 32, seed=1)   # fallback path (W//2 = 6)
    print("KERNEL_OK")
</pallas_src>

<mosaic_0001>
module attributes {stable_mosaic.version = 11 : i64} {
  func.func @_fused_patch_merge_kernel(%arg0: i32, %arg1: memref<8x2x8x64xf32, #tpu.memory_space<vmem>>, %arg2: memref<2x64xf32, #tpu.memory_space<vmem>>, %arg3: memref<2x64xf32, #tpu.memory_space<vmem>>, %arg4: memref<2x64x64xf32, #tpu.memory_space<vmem>>, %arg5: memref<64x64xf32, #tpu.memory_space<vmem>>) attributes {dimension_semantics = [#tpu.dimension_semantics<parallel>], iteration_bounds = array<i64: 2>, scalar_prefetch = 0 : i64, scratch_operands = 0 : i64, tpu.core_type = #tpu.core_type<tc>, window_params = [{transform_indices = @transform_0, window_bounds = array<i64: 8, 2, 8, 64>}, {pipeline_mode = #tpu.pipeline_mode<synchronous>, transform_indices = @transform_1, window_bounds = array<i64: 2, 64>}, {pipeline_mode = #tpu.pipeline_mode<synchronous>, transform_indices = @transform_2, window_bounds = array<i64: 2, 64>}, {pipeline_mode = #tpu.pipeline_mode<synchronous>, transform_indices = @transform_3, window_bounds = array<i64: 2, 64, 64>}, {transform_indices = @transform_4, window_bounds = array<i64: 64, 64>}]} {
    %c0 = arith.constant 0 : index
    %c0_0 = arith.constant 0 : index
    %c0_1 = arith.constant 0 : index
    %c0_2 = arith.constant 0 : index
    %0 = vector.load %arg1[%c0, %c0_0, %c0_1, %c0_2] : memref<8x2x8x64xf32, #tpu.memory_space<vmem>>, vector<8x2x8x64xf32>
    %1 = vector.extract_strided_slice %0 {offsets = [0, 0, 0, 0], sizes = [8, 1, 8, 64], strides = [1, 1, 1, 1]} : vector<8x2x8x64xf32> to vector<8x1x8x64xf32>
    %2 = vector.shape_cast %1 : vector<8x1x8x64xf32> to vector<8x8x64xf32>
    %3 = vector.shape_cast %2 : vector<8x8x64xf32> to vector<64x64xf32>
    %4 = vector.extract_strided_slice %0 {offsets = [0, 1, 0, 0], sizes = [8, 1, 8, 64], strides = [1, 1, 1, 1]} : vector<8x2x8x64xf32> to vector<8x1x8x64xf32>
    %5 = vector.shape_cast %4 : vector<8x1x8x64xf32> to vector<8x8x64xf32>
    %6 = vector.shape_cast %5 : vector<8x8x64xf32> to vector<64x64xf32>
    %cst = arith.constant dense<0.000000e+00> : vector<64xf32>
    %7 = vector.multi_reduction <add>, %3, %cst [1] : vector<64x64xf32> to vector<64xf32>
    %8 = vector.shape_cast %7 : vector<64xf32> to vector<64x1xf32>
    %cst_3 = arith.constant dense<0.000000e+00> : vector<64xf32>
    %9 = vector.multi_reduction <add>, %6, %cst_3 [1] : vector<64x64xf32> to vector<64xf32>
    %10 = vector.shape_cast %9 : vector<64xf32> to vector<64x1xf32>
    %11 = arith.addf %8, %10 : vector<64x1xf32>
    %cst_4 = arith.constant 7.812500e-03 : f32
    %12 = vector.broadcast %cst_4 : f32 to vector<64x1xf32>
    %13 = arith.mulf %11, %12 : vector<64x1xf32>
    %14 = vector.broadcast %13 : vector<64x1xf32> to vector<64x64xf32>
    %15 = arith.subf %3, %14 : vector<64x64xf32>
    %16 = vector.broadcast %13 : vector<64x1xf32> to vector<64x64xf32>
    %17 = arith.subf %6, %16 : vector<64x64xf32>
    %18 = arith.mulf %15, %15 : vector<64x64xf32>
    %cst_5 = arith.constant dense<0.000000e+00> : vector<64xf32>
    %19 = vector.multi_reduction <add>, %18, %cst_5 [1] : vector<64x64xf32> to vector<64xf32>
    %20 = vector.shape_cast %19 : vector<64xf32> to vector<64x1xf32>
    %21 = arith.mulf %17, %17 : vector<64x64xf32>
    %cst_6 = arith.constant dense<0.000000e+00> : vector<64xf32>
    %22 = vector.multi_reduction <add>, %21, %cst_6 [1] : vector<64x64xf32> to vector<64xf32>
    %23 = vector.shape_cast %22 : vector<64xf32> to vector<64x1xf32>
    %24 = arith.addf %20, %23 : vector<64x1xf32>
    %cst_7 = arith.constant 7.812500e-03 : f32
    %25 = vector.broadcast %cst_7 : f32 to vector<64x1xf32>
    %26 = arith.mulf %24, %25 : vector<64x1xf32>
    %cst_8 = arith.constant 9.99999974E-6 : f32
    %27 = vector.broadcast %cst_8 : f32 to vector<64x1xf32>
    %28 = arith.addf %26, %27 : vector<64x1xf32>
    %29 = math.rsqrt %28 : vector<64x1xf32>
    %c0_9 = arith.constant 0 : index
    %c0_10 = arith.constant 0 : index
    %30 = vector.load %arg2[%c0_9, %c0_10] : memref<2x64xf32, #tpu.memory_space<vmem>>, vector<2x64xf32>
    %c0_11 = arith.constant 0 : index
    %c0_12 = arith.constant 0 : index
    %31 = vector.load %arg3[%c0_11, %c0_12] : memref<2x64xf32, #tpu.memory_space<vmem>>, vector<2x64xf32>
    %32 = vector.broadcast %29 : vector<64x1xf32> to vector<64x64xf32>
    %33 = arith.mulf %15, %32 : vector<64x64xf32>
    %34 = vector.extract_strided_slice %30 {offsets = [0, 0], sizes = [1, 64], strides = [1, 1]} : vector<2x64xf32> to vector<1x64xf32>
    %35 = vector.broadcast %34 : vector<1x64xf32> to vector<64x64xf32>
    %36 = arith.mulf %33, %35 : vector<64x64xf32>
    %37 = vector.extract_strided_slice %31 {offsets = [0, 0], sizes = [1, 64], strides = [1, 1]} : vector<2x64xf32> to vector<1x64xf32>
    %38 = vector.broadcast %37 : vector<1x64xf32> to vector<64x64xf32>
    %39 = arith.addf %36, %38 : vector<64x64xf32>
    %40 = vector.broadcast %29 : vector<64x1xf32> to vector<64x64xf32>
    %41 = arith.mulf %17, %40 : vector<64x64xf32>
    %42 = vector.extract_strided_slice %30 {offsets = [1, 0], sizes = [1, 64], strides = [1, 1]} : vector<2x64xf32> to vector<1x64xf32>
    %43 = vector.broadcast %42 : vector<1x64xf32> to vector<64x64xf32>
    %44 = arith.mulf %41, %43 : vector<64x64xf32>
    %45 = vector.extract_strided_slice %31 {offsets = [1, 0], sizes = [1, 64], strides = [1, 1]} : vector<2x64xf32> to vector<1x64xf32>
    %46 = vector.broadcast %45 : vector<1x64xf32> to vector<64x64xf32>
    %47 = arith.addf %44, %46 : vector<64x64xf32>
    %c0_13 = arith.constant 0 : index
    %c0_14 = arith.constant 0 : index
    %c0_15 = arith.constant 0 : index
    %48 = vector.load %arg4[%c0_13, %c0_14, %c0_15] : memref<2x64x64xf32, #tpu.memory_space<vmem>>, vector<1x64x64xf32>
    %49 = vector.shape_cast %48 : vector<1x64x64xf32> to vector<64x64xf32>
    %cst_16 = arith.constant dense<0.000000e+00> : vector<64x64xf32>
    %50 = tpu.matmul %39, %49, %cst_16 {dimension_numbers = #tpu.dot_dimension_numbers<[1], [0], [0], [1], [0, 0, 1, 1], [], []>} : vector<64x64xf32>, vector<64x64xf32>, vector<64x64xf32> -> vector<64x64xf32>
    %c1 = arith.constant 1 : index
    %c0_17 = arith.constant 0 : index
    %c0_18 = arith.constant 0 : index
    %51 = vector.load %arg4[%c1, %c0_17, %c0_18] : memref<2x64x64xf32, #tpu.memory_space<vmem>>, vector<1x64x64xf32>
    %52 = vector.shape_cast %51 : vector<1x64x64xf32> to vector<64x64xf32>
    %cst_19 = arith.constant dense<0.000000e+00> : vector<64x64xf32>
    %53 = tpu.matmul %47, %52, %cst_19 {dimension_numbers = #tpu.dot_dimension_numbers<[1], [0], [0], [1], [0, 0, 1, 1], [], []>} : vector<64x64xf32>, vector<64x64xf32>, vector<64x64xf32> -> vector<64x64xf32>
    %54 = arith.addf %50, %53 : vector<64x64xf32>
    %c0_20 = arith.constant 0 : index
    %c0_21 = arith.constant 0 : index
    %55 = vector.load %arg5[%c0_20, %c0_21] : memref<64x64xf32, #tpu.memory_space<vmem>>, vector<64x64xf32>
    tpu.vector_store %arg5[%c0_20, %c0_21], %54 {strides = array<i32>} : memref<64x64xf32, #tpu.memory_space<vmem>>, vector<64x64xf32>,
    return
  }
  func.func @transform_0(%arg0: i32) -> (i32, i32, i32, i32) {
    %c0_i32 = arith.constant 0 : i32
    %c0_i32_0 = arith.constant 0 : i32
    %c0_i32_1 = arith.constant 0 : i32
    %c0_i32_2 = arith.constant 0 : i32
    return %arg0, %c0_i32, %c0_i32_0, %c0_i32_1 : i32, i32, i32, i32
  }
  func.func @transform_1(%arg0: i32) -> (i32, i32) {
    %c0_i32 = arith.constant 0 : i32
    %c0_i32_0 = arith.constant 0 : i32
    %c0_i32_1 = arith.constant 0 : i32
    return %c0_i32, %c0_i32_0 : i32, i32
  }
  func.func @transform_2(%arg0: i32) -> (i32, i32) {
    %c0_i32 = arith.constant 0 : i32
    %c0_i32_0 = arith.constant 0 : i32
    %c0_i32_1 = arith.constant 0 : i32
    return %c0_i32, %c0_i32_0 : i32, i32
  }
  func.func @transform_3(%arg0: i32) -> (i32, i32, i32) {
    %c0_i32 = arith.constant 0 : i32
    %c0_i32_0 = arith.constant 0 : i32
    %c0_i32_1 = arith.constant 0 : i32
    %c0_i32_2 = arith.constant 0 : i32
    return %c0_i32, %c0_i32_0, %c0_i32_1 : i32, i32, i32
  }
  func.func @transform_4(%arg0: i32) -> (i32, i32) {
    %c0_i32 = arith.constant 0 : i32
    %c0_i32_0 = arith.constant 0 : i32
    return %arg0, %c0_i32 : i32, i32
  }
}

</mosaic_0001>

<llo_original>
// kernel: tpu_custom_call.1
$region0: #{tpu_custom_call.1}
  #allocation0 [shape = 'u32[]', space=smem, size = 0x4, offset = 0x4, fixed_abs, tag = 'smem constant byte address 0x4 - core index']
  #allocation1 [shape = 'u32[144,128]{1,0:T(1,128)}', space=vmem, size = 0x12000, scoped, tag = 'internal scratch']
  %s0 = inlined_call_operand.hbm [shape: f32[16,2,8,64], index: 0, kind: input, shape index: {}]
  %s1 = inlined_call_operand.vmem [shape: f32[2,64], index: 1, kind: input, shape index: {}]
  %s2 = inlined_call_operand.vmem [shape: f32[2,64], index: 2, kind: input, shape index: {}]
  %s3 = inlined_call_operand.hbm [shape: f32[2,64,64], index: 3, kind: input, shape index: {}]
  %s4 = inlined_call_operand.vmem [shape: f32[128,64], index: 4, kind: output, shape index: {}]
  %s5 = sld [smem:[#allocation0]]
  $region57: #{tpu_custom_call.1} parent=0
    _
  %s7 = ssub.s32 1, %s5
  %s8 = scalar_select 0, %s7, %s5
  $region1: #{tpu_custom_call.1} parent=0
    #allocation2 [shape = 'u8[131072]{0}', space=vmem, size = 0x20000, scoped, tag = 'input window, operand 0']
    #allocation3 [shape = 's32[2]{0}', space=sflag, size = 0x8, scoped, tag = 'scoped memory for tpu_custom_call.1']
    #allocation4 [shape = 'u8[65536]{0}', space=vmem, size = 0x10000, scoped, tag = 'input window, operand 3, single buffered']
    #allocation5 [shape = 's32[1]{0}', space=sflag, size = 0x4, scoped, tag = 'scoped memory for tpu_custom_call.1']
    %9 = vsyncpa [#allocation3], 0
    %s10 = scalar_lea.sflag [#allocation3], 1
    %11 = vsyncpa %s10, 0
    %12 = vsyncpa [#allocation5], 0
    loop: start=0, step=1, limit=4
    $region2: #{tpu_custom_call.1} parent=1 // loop_pre_header
      _
    $region3: #{tpu_custom_call.1} parent=1 // loop_header
      %s14 = sphi 0, %s18
      %p15 = scmp.ge.s32.totalorder %s14, 4
      %s24 = sphi 0, %s26
      %s27 = sphi 0, %s24
      %s28 = sphi 0, %s27
      %s44 = sphi 0, %s28
      %s48 = sphi 0, %s48
      %s50 = sphi 0, %s48
      %s51 = sphi 0, %s50
      %s65 = sphi 0, %s51
      %s69 = sphi 0, %s69
      %s71 = sphi 0, %s69
      %s72 = sphi 0, %s71
      %s86 = sphi 0, %s72
      %s90 = sphi 0, %s90
      %s92 = sphi 0, %s90
      %s93 = sphi 0, %s92
      %s107 = sphi 0, %s93
      %s113 = sphi 0, %s115
      %s116 = sphi 0, %s113
      %s117 = sphi 0, %s116
      %s133 = sphi 0, %s117
    $region4: #{tpu_custom_call.1} parent=1 // loop_header_branch
      %17 = sbr.rel (%p15) target = $region8
    $region5: #{tpu_custom_call.1} parent=1 // loop_body
      %s19 = ssub.s32 %s14, 1
      %s20 = ssub.s32 %s14, 2
      %s21 = sadd.s32 %s14, 1
      %s22 = ssub.s32 %s14, %s21
      %p23 = scmp.eq.s32.totalorder %s22, 0
      %s25 = sadd.s32 %s24, 1
      %s26 = scalar_select %p23, %s24, %s25
      %p29 = pneg %p23
      %p30 = scmp.eq.s32.totalorder %s14, 1
      %p31 = por %p29, %p30
      %p32 = scmp.ne.s32.totalorder %s24, %s27
      %p33 = scmp.eq.s32.totalorder %s14, 0
      %p34 = por %p32, %p33
      %p35 = scmp.ne.s32.totalorder %s24, %s27
      %p36 = scmp.eq.s32.totalorder %s19, 1
      %p37 = por %p35, %p36
      %p38 = scmp.ne.s32.totalorder %s27, %s28
      %p39 = scmp.eq.s32.totalorder %s19, 0
      %p40 = por %p38, %p39
      %p41 = scmp.ne.s32.totalorder %s27, %s28
      %p42 = scmp.eq.s32.totalorder %s20, 1
      %p43 = por %p41, %p42
      %p45 = scmp.ne.s32.totalorder %s28, %s44
      %p46 = scmp.eq.s32.totalorder %s20, 0
      %p47 = por %p45, %p46
      %s49 = sadd.s32 %s48, 1
      %p52 = scmp.eq.s32.totalorder %s14, 1
      %p53 = scmp.ne.s32.totalorder %s48, %s50
      %p54 = scmp.eq.s32.totalorder %s14, 0
      %p55 = por %p53, %p54
      %p56 = scmp.ne.s32.totalorder %s48, %s50
      %p57 = scmp.eq.s32.totalorder %s19, 1
      %p58 = por %p56, %p57
      %p59 = scmp.ne.s32.totalorder %s50, %s51
      %p60 = scmp.eq.s32.totalorder %s19, 0
      %p61 = por %p59, %p60
      %p62 = scmp.ne.s32.totalorder %s50, %s51
      %p63 = scmp.eq.s32.totalorder %s20, 1
      %p64 = por %p62, %p63
      %p66 = scmp.ne.s32.totalorder %s51, %s65
      %p67 = scmp.eq.s32.totalorder %s20, 0
      %p68 = por %p66, %p67
      %s70 = sadd.s32 %s69, 1
      %p73 = scmp.eq.s32.totalorder %s14, 1
      %p74 = scmp.ne.s32.totalorder %s69, %s71
      %p75 = scmp.eq.s32.totalorder %s14, 0
      %p76 = por %p74, %p75
      %p77 = scmp.ne.s32.totalorder %s69, %s71
      %p78 = scmp.eq.s32.totalorder %s19, 1
      %p79 = por %p77, %p78
      %p80 = scmp.ne.s32.totalorder %s71, %s72
      %p81 = scmp.eq.s32.totalorder %s19, 0
      %p82 = por %p80, %p81
      %p83 = scmp.ne.s32.totalorder %s71, %s72
      %p84 = scmp.eq.s32.totalorder %s20, 1
      %p85 = por %p83, %p84
      %p87 = scmp.ne.s32.totalorder %s72, %s86
      %p88 = scmp.eq.s32.totalorder %s20, 0
      %p89 = por %p87, %p88
      %s91 = sadd.s32 %s90, 1
      %p94 = scmp.eq.s32.totalorder %s14, 1
      %p95 = scmp.ne.s32.totalorder %s90, %s92
      %p96 = scmp.eq.s32.totalorder %s14, 0
      %p97 = por %p95, %p96
      %p98 = scmp.ne.s32.totalorder %s90, %s92
      %p99 = scmp.eq.s32.totalorder %s19, 1
      %p100 = por %p98, %p99
      %p101 = scmp.ne.s32.totalorder %s92, %s93
      %p102 = scmp.eq.s32.totalorder %s19, 0
      %p103 = por %p101, %p102
      %p104 = scmp.ne.s32.totalorder %s92, %s93
      %p105 = scmp.eq.s32.totalorder %s20, 1
      %p106 = por %p104, %p105
      %p108 = scmp.ne.s32.totalorder %s93, %s107
      %p109 = scmp.eq.s32.totalorder %s20, 0
      %p110 = por %p108, %p109
      %s111 = ssub.s32 %s14, %s21
      %p112 = scmp.eq.s32.totalorder %s111, 0
      %s114 = sadd.s32 %s113, 1
      %s115 = scalar_select %p112, %s113, %s114
      %p118 = pneg %p112
      %p119 = scmp.eq.s32.totalorder %s14, 1
      %p120 = por %p118, %p119
      %p121 = scmp.ne.s32.totalorder %s113, %s116
      %p122 = scmp.eq.s32.totalorder %s14, 0
      %p123 = por %p121, %p122
      %p124 = scmp.ne.s32.totalorder %s113, %s116
      %p125 = scmp.eq.s32.totalorder %s19, 1
      %p126 = por %p124, %p125
      %p127 = scmp.ne.s32.totalorder %s116, %s117
      %p128 = scmp.eq.s32.totalorder %s19, 0
      %p129 = por %p127, %p128
      %p130 = scmp.ne.s32.totalorder %s116, %s117
      %p131 = scmp.eq.s32.totalorder %s20, 1
      %p132 = por %p130, %p131
      %p134 = scmp.ne.s32.totalorder %s117, %s133
      %p135 = scmp.eq.s32.totalorder %s20, 0
      %p136 = por %p134, %p135
      %p137 = scmp.le.s32.totalorder 1, %s14
      %p138 = scmp.lt.s32.totalorder %s14, 3
      %p139 = pnand %p137, %p138
      %p140 = pneg %p139
      // Predicated region
      $region9: #{tpu_custom_call.1} parent=5 // pred_check
        _
      $region10: #{tpu_custom_call.1} parent=5 // pred_check_branch
        %142 = sbr.rel (%p139) target = $region12
      $region11: #{tpu_custom_call.1} parent=5 // pred_region
        %s143 = ssub.s32 %s14, 1
        // Predicated region
        $region13: #{tpu_custom_call.1} parent=11 // pred_check
          %p144 = pneg %p61
        $region14: #{tpu_custom_call.1} parent=11 // pred_check_branch
          %146 = sbr.rel (%p144) target = $region16
        $region15: #{tpu_custom_call.1} parent=11 // pred_region
          _
        $region16: #{tpu_custom_call.1} parent=11 // pred_fallthru
          _
        // Predicated region
        $region17: #{tpu_custom_call.1} parent=11 // pred_check
          %p147 = pneg %p82
        $region18: #{tpu_custom_call.1} parent=11 // pred_check_branch
          %149 = sbr.rel (%p147) target = $region20
        $region19: #{tpu_custom_call.1} parent=11 // pred_region
          _
        $region20: #{tpu_custom_call.1} parent=11 // pred_fallthru
          _
        // Predicated region
        $region21: #{tpu_custom_call.1} parent=11 // pred_check
          %p150 = pneg %p103
        $region22: #{tpu_custom_call.1} parent=11 // pred_check_branch
          %152 = sbr.rel (%p150) target = $region24
        $region23: #{tpu_custom_call.1} parent=11 // pred_region
          %s154 = ssub.s32 2048, 2048
          %155 = vsyncadd [#allocation5], %s154
          %s156 = sshll.u32 [#allocation4], 4
          %s157 = int_to_ptr.vmem [resolvable:$true] %s156
          %162 = dma.hbm_to_vmem [thread:$0]  %s3, 2048, %s157, [#allocation5], 128, 128, 8
        $region24: #{tpu_custom_call.1} parent=11 // pred_fallthru
          _
      $region12: #{tpu_custom_call.1} parent=5 // pred_fallthru
        _
      %p163 = scmp.lt.s32.totalorder %s14, 2
      // Predicated region
      $region25: #{tpu_custom_call.1} parent=5 // pred_check
        %p164 = pneg %p163
      $region26: #{tpu_custom_call.1} parent=5 // pred_check_branch
        %166 = sbr.rel (%p164) target = $region28
      $region27: #{tpu_custom_call.1} parent=5 // pred_region
        // Predicated region
        $region29: #{tpu_custom_call.1} parent=27 // pred_check
          %p167 = pneg %p34
        $region30: #{tpu_custom_call.1} parent=27 // pred_check_branch
          %169 = sbr.rel (%p167) target = $region32
        $region31: #{tpu_custom_call.1} parent=27 // pred_region
          %s170 = sand.u32 %s24, 1
          %s171 = scalar_lea.sflag [#allocation3], %s170
          %s172 = sand.u32 %s24, 1
          %s173 = smul.addr %s172, 128
          %s174 = scalar_lea.vmem [#allocation2], %s173
          %s175 = smul.u32 8, %s14
          %s177 = ssub.s32 2048, 2048
          %178 = vsyncadd %s171, %s177
          %s179 = smul.addr %s175, 2
          %s180 = smul.addr %s179, 128
          %s181 = scalar_lea.hbm %s0, %s180
          %s182 = sshll.u32 %s174, 4
          %s183 = int_to_ptr.vmem [resolvable:$true] %s182
          %188 = dma.hbm_to_vmem [thread:$0]  %s181, 2048, %s183, %s171, 128, 128, 8
        $region32: #{tpu_custom_call.1} parent=27 // pred_fallthru
          _
      $region28: #{tpu_custom_call.1} parent=5 // pred_fallthru
        _
      %p189 = scmp.le.s32.totalorder 1, %s14
      %p190 = scmp.lt.s32.totalorder %s14, 3
      %p191 = pnand %p189, %p190
      %p192 = pneg %p191
      // Predicated region
      $region33: #{tpu_custom_call.1} parent=5 // pred_check
        _
      $region34: #{tpu_custom_call.1} parent=5 // pred_check_branch
        %194 = sbr.rel (%p191) target = $region36
      $region35: #{tpu_custom_call.1} parent=5 // pred_region
        %s195 = ssub.s32 %s14, 1
        %s196 = sand.u32 %s27, 1
        %s197 = scalar_lea.sflag [#allocation3], %s196
        %s198 = sand.u32 %s27, 1
        %s199 = smul.addr %s198, 128
        %s200 = scalar_lea.vmem [#allocation2], %s199
        // Predicated region
        $region37: #{tpu_custom_call.1} parent=35 // pred_check
          %p201 = pneg %p40
        $region38: #{tpu_custom_call.1} parent=35 // pred_check_branch
          %203 = sbr.rel (%p201) target = $region40
        $region39: #{tpu_custom_call.1} parent=35 // pred_region
          %204 = dma.done %s197, 2048
        $region40: #{tpu_custom_call.1} parent=35 // pred_fallthru
          _
        // Predicated region
        $region41: #{tpu_custom_call.1} parent=35 // pred_check
          %p205 = pneg %p103
        $region42: #{tpu_custom_call.1} parent=35 // pred_check_branch
          %207 = sbr.rel (%p205) target = $region44
        $region43: #{tpu_custom_call.1} parent=35 // pred_region
          %208 = dma.done [#allocation5], 2048
        $region44: #{tpu_custom_call.1} parent=35 // pred_fallthru
          _
        %s209 = sand.u32 %s27, 1
        %s210 = scalar_lea.sflag [#allocation3], %s209
        %s211 = sand.u32 %s27, 1
        %s212 = smul.addr %s211, 128
        %s213 = scalar_lea.vmem [#allocation2], %s212
        %p214 = pneg %p40
        %p215 = pneg %p37
        %p216 = pneg %p61
        %p217 = pneg %p58
        %p218 = pneg %p82
        %p219 = pneg %p79
        %p220 = pneg %p103
        %p221 = pneg %p100
        %p222 = pneg %p129
        %p223 = pneg %p126
        %s224 = smul.u32 8, %s19
        %p225 = scmp.lt.s32.totalorder %s224, 15
        %s226 = scalar_select %p225, %s224, 15
        %s227 = smul.addr %s226, 8
        %s228 = scalar_lea.vmem %s4, %s227
        %s229 = smul.u32 8, %s19
        %s230 = smul.u32 8, %s19
        %p231 = scmp.lt.s32.totalorder %s230, 15
        %s232 = scalar_select %p231, %s230, 15
        %s233 = smul.addr %s232, 8
        %s234 = scalar_lea.vmem %s4, %s233
        %s235 = smul.u32 8, %s19
        %v236 = vld [vmem:[%s200] sm:$0xff]
        %v237 = vld [vmem:[%s200 + $0x8] sm:$0xff]
        %v238 = vld [vmem:[%s200 + $0x10] sm:$0xff]
        %v239 = vld [vmem:[%s200 + $0x18] sm:$0xff]
        %v240 = vld [vmem:[%s200 + $0x20] sm:$0xff]
        %v241 = vld [vmem:[%s200 + $0x28] sm:$0xff]
        %v242 = vld [vmem:[%s200 + $0x30] sm:$0xff]
        %v243 = vld [vmem:[%s200 + $0x38] sm:$0xff]
        %v244 = vld [vmem:[%s200 + $0x40] sm:$0xff]
        %v245 = vld [vmem:[%s200 + $0x48] sm:$0xff]
        %v246 = vld [vmem:[%s200 + $0x50] sm:$0xff]
        %v247 = vld [vmem:[%s200 + $0x58] sm:$0xff]
        %v248 = vld [vmem:[%s200 + $0x60] sm:$0xff]
        %v249 = vld [vmem:[%s200 + $0x68] sm:$0xff]
        %v250 = vld [vmem:[%s200 + $0x70] sm:$0xff]
        %v251 = vld [vmem:[%s200 + $0x78] sm:$0xff]
        %vm252 = vcmask 523264
        %v253 = vsel %vm252, %v236, 0.0
        %254 = vadd.xlane.f32.xlu0 %v253
        %v255 = vpop.xlane.xlu0 %254
        %v256 = vsel %vm252, %v238, 0.0
        %257 = vadd.xlane.f32.xlu0 %v256
        %v258 = vpop.xlane.xlu0 %257
        %v259 = vsel %vm252, %v240, 0.0
        %260 = vadd.xlane.f32.xlu0 %v259
        %v261 = vpop.xlane.xlu0 %260
        %v262 = vsel %vm252, %v242, 0.0
        %263 = vadd.xlane.f32.xlu0 %v262
        %v264 = vpop.xlane.xlu0 %263
        %v265 = vsel %vm252, %v244, 0.0
        %266 = vadd.xlane.f32.xlu0 %v265
        %v267 = vpop.xlane.xlu0 %266
        %v268 = vsel %vm252, %v246, 0.0
        %269 = vadd.xlane.f32.xlu0 %v268
        %v270 = vpop.xlane.xlu0 %269
        %v271 = vsel %vm252, %v248, 0.0
        %272 = vadd.xlane.f32.xlu0 %v271
        %v273 = vpop.xlane.xlu0 %272
        %v274 = vsel %vm252, %v250, 0.0
        %275 = vadd.xlane.f32.xlu0 %v274
        %v276 = vpop.xlane.xlu0 %275
        %v277 = vsel %vm252, %v237, 0.0
        %278 = vadd.xlane.f32.xlu0 %v277
        %v279 = vpop.xlane.xlu0 %278
        %v280 = vsel %vm252, %v239, 0.0
        %281 = vadd.xlane.f32.xlu0 %v280
        %v282 = vpop.xlane.xlu0 %281
        %v283 = vsel %vm252, %v241, 0.0
        %284 = vadd.xlane.f32.xlu0 %v283
        %v285 = vpop.xlane.xlu0 %284
        %v286 = vsel %vm252, %v243, 0.0
        %287 = vadd.xlane.f32.xlu0 %v286
        %v288 = vpop.xlane.xlu0 %287
        %v289 = vsel %vm252, %v245, 0.0
        %290 = vadd.xlane.f32.xlu0 %v289
        %v291 = vpop.xlane.xlu0 %290
        %v292 = vsel %vm252, %v247, 0.0
        %293 = vadd.xlane.f32.xlu0 %v292
        %v294 = vpop.xlane.xlu0 %293
        %v295 = vsel %vm252, %v249, 0.0
        %296 = vadd.xlane.f32.xlu0 %v295
        %v297 = vpop.xlane.xlu0 %296
        %v298 = vsel %vm252, %v251, 0.0
        %299 = vadd.xlane.f32.xlu0 %v298
        %v300 = vpop.xlane.xlu0 %299
        %v301 = vadd.f32 %v255, %v279
        %v302 = vadd.f32 %v258, %v282
        %v303 = vadd.f32 %v261, %v285
        %v304 = vadd.f32 %v264, %v288
        %v305 = vadd.f32 %v267, %v291
        %v306 = vadd.f32 %v270, %v294
        %v307 = vadd.f32 %v273, %v297
        %v308 = vadd.f32 %v276, %v300
        %v309 = vmul.f32 %v301, 0.0078125
        %v310 = vmul.f32 %v302, 0.0078125
        %v311 = vmul.f32 %v303, 0.0078125
        %v312 = vmul.f32 %v304, 0.0078125
        %v313 = vmul.f32 %v305, 0.0078125
        %v314 = vmul.f32 %v306, 0.0078125
        %v315 = vmul.f32 %v307, 0.0078125
        %v316 = vmul.f32 %v308, 0.0078125
        %v317 = vsub.f32 %v236, %v309
        %v318 = vsub.f32 %v238, %v310
        %v319 = vsub.f32 %v240, %v311
        %v320 = vsub.f32 %v242, %v312
        %v321 = vsub.f32 %v244, %v313
        %v322 = vsub.f32 %v246, %v314
        %v323 = vsub.f32 %v248, %v315
        %v324 = vsub.f32 %v250, %v316
        %v325 = vsub.f32 %v237, %v309
        %v326 = vsub.f32 %v239, %v310
        %v327 = vsub.f32 %v241, %v311
        %v328 = vsub.f32 %v243, %v312
        %v329 = vsub.f32 %v245, %v313
        %v330 = vsub.f32 %v247, %v314
        %v331 = vsub.f32 %v249, %v315
        %v332 = vsub.f32 %v251, %v316
        %v333 = vmul.f32 %v317, %v317
        %v334 = vmul.f32 %v318, %v318
        %v335 = vmul.f32 %v319, %v319
        %v336 = vmul.f32 %v320, %v320
        %v337 = vmul.f32 %v321, %v321
        %v338 = vmul.f32 %v322, %v322
        %v339 = vmul.f32 %v323, %v323
        %v340 = vmul.f32 %v324, %v324
        %v341 = vsel %vm252, %v333, 0.0
        %342 = vadd.xlane.f32.xlu0 %v341
        %v343 = vpop.xlane.xlu0 %342
        %v344 = vsel %vm252, %v334, 0.0
        %345 = vadd.xlane.f32.xlu0 %v344
        %v346 = vpop.xlane.xlu0 %345
        %v347 = vsel %vm252, %v335, 0.0
        %348 = vadd.xlane.f32.xlu0 %v347
        %v349 = vpop.xlane.xlu0 %348
        %v350 = vsel %vm252, %v336, 0.0
        %351 = vadd.xlane.f32.xlu0 %v350
        %v352 = vpop.xlane.xlu0 %351
        %v353 = vsel %vm252, %v337, 0.0
        %354 = vadd.xlane.f32.xlu0 %v353
        %v355 = vpop.xlane.xlu0 %354
        %v356 = vsel %vm252, %v338, 0.0
        %357 = vadd.xlane.f32.xlu0 %v356
        %v358 = vpop.xlane.xlu0 %357
        %v359 = vsel %vm252, %v339, 0.0
        %360 = vadd.xlane.f32.xlu0 %v359
        %v361 = vpop.xlane.xlu0 %360
        %v362 = vsel %vm252, %v340, 0.0
        %363 = vadd.xlane.f32.xlu0 %v362
        %v364 = vpop.xlane.xlu0 %363
        %v365 = vmul.f32 %v325, %v325
        %v366 = vmul.f32 %v326, %v326
        %v367 = vmul.f32 %v327, %v327
        %v368 = vmul.f32 %v328, %v328
        %v369 = vmul.f32 %v329, %v329
        %v370 = vmul.f32 %v330, %v330
        %v371 = vmul.f32 %v331, %v331
        %v372 = vmul.f32 %v332, %v332
        %v373 = vsel %vm252, %v365, 0.0
        %374 = vadd.xlane.f32.xlu0 %v373
        %v375 = vpop.xlane.xlu0 %374
        %v376 = vsel %vm252, %v366, 0.0
        %377 = vadd.xlane.f32.xlu0 %v376
        %v378 = vpop.xlane.xlu0 %377
        %v379 = vsel %vm252, %v367, 0.0
        %380 = vadd.xlane.f32.xlu0 %v379
        %v381 = vpop.xlane.xlu0 %380
        %v382 = vsel %vm252, %v368, 0.0
        %383 = vadd.xlane.f32.xlu0 %v382
        %v384 = vpop.xlane.xlu0 %383
        %v385 = vsel %vm252, %v369, 0.0
        %386 = vadd.xlane.f32.xlu0 %v385
        %v387 = vpop.xlane.xlu0 %386
        %v388 = vsel %vm252, %v370, 0.0
        %389 = vadd.xlane.f32.xlu0 %v388
        %v390 = vpop.xlane.xlu0 %389
        %v391 = vsel %vm252, %v371, 0.0
        %392 = vadd.xlane.f32.xlu0 %v391
        %v393 = vpop.xlane.xlu0 %392
        %v394 = vsel %vm252, %v372, 0.0
        %395 = vadd.xlane.f32.xlu0 %v394
        %v396 = vpop.xlane.xlu0 %395
        %v397 = vadd.f32 %v343, %v375
        %v398 = vadd.f32 %v346, %v378
        %v399 = vadd.f32 %v349, %v381
        %v400 = vadd.f32 %v352, %v384
        %v401 = vadd.f32 %v355, %v387
        %v402 = vadd.f32 %v358, %v390
        %v403 = vadd.f32 %v361, %v393
        %v404 = vadd.f32 %v364, %v396
        %v405 = vmul.f32 %v397, 0.0078125
        %v406 = vmul.f32 %v398, 0.0078125
        %v407 = vmul.f32 %v399, 0.0078125
        %v408 = vmul.f32 %v400, 0.0078125
        %v409 = vmul.f32 %v401, 0.0078125
        %v410 = vmul.f32 %v402, 0.0078125
        %v411 = vmul.f32 %v403, 0.0078125
        %v412 = vmul.f32 %v404, 0.0078125
        %v413 = vadd.f32 %v405, 1e-05
        %v414 = vadd.f32 %v406, 1e-05
        %v415 = vadd.f32 %v407, 1e-05
        %v416 = vadd.f32 %v408, 1e-05
        %v417 = vadd.f32 %v409, 1e-05
        %v418 = vadd.f32 %v410, 1e-05
        %v419 = vadd.f32 %v411, 1e-05
        %v420 = vadd.f32 %v412, 1e-05
        %v421 = vrsqrt.pop %v413
        %v422 = vrsqrt.pop %v414
        %v423 = vrsqrt.pop %v415
        %v424 = vrsqrt.pop %v416
        %v425 = vrsqrt.pop %v417
        %v426 = vrsqrt.pop %v418
        %v427 = vrsqrt.pop %v419
        %v428 = vrsqrt.pop %v420
        %v429 = vld [vmem:[%s1] sm:$0x3]
        %v430 = vld [vmem:[%s2] sm:$0x3]
        %v431 = vmul.f32 %v317, %v421
        %v432 = vmul.f32 %v318, %v422
        %v433 = vmul.f32 %v319, %v423
        %v434 = vmul.f32 %v320, %v424
        %v435 = vmul.f32 %v321, %v425
        %v436 = vmul.f32 %v322, %v426
        %v437 = vmul.f32 %v323, %v427
        %v438 = vmul.f32 %v324, %v428
        %v439 = vlaneseq
        %v440 = vshrl.u32 %v439, 7
        %v441 = vsub.s32 0, %v440
        %v442 = vrot.slane %v429, %v441
        %v443 = vmul.f32 %v431, %v442
        %v444 = vmul.f32 %v432, %v442
        %v445 = vmul.f32 %v433, %v442
        %v446 = vmul.f32 %v434, %v442
        %v447 = vmul.f32 %v435, %v442
        %v448 = vmul.f32 %v436, %v442
        %v449 = vmul.f32 %v437, %v442
        %v450 = vmul.f32 %v438, %v442
        %v451 = vlaneseq
        %v452 = vshrl.u32 %v451, 7
        %v453 = vsub.s32 0, %v452
        %v454 = vrot.slane %v430, %v453
        %v455 = vadd.f32 %v443, %v454
        %v456 = vadd.f32 %v444, %v454
        %v457 = vadd.f32 %v445, %v454
        %v458 = vadd.f32 %v446, %v454
        %v459 = vadd.f32 %v447, %v454
        %v460 = vadd.f32 %v448, %v454
        %v461 = vadd.f32 %v449, %v454
        %v462 = vadd.f32 %v450, %v454
        %v463 = vmul.f32 %v325, %v421
        %v464 = vmul.f32 %v326, %v422
        %v465 = vmul.f32 %v327, %v423
        %v466 = vmul.f32 %v328, %v424
        %v467 = vmul.f32 %v329, %v425
        %v468 = vmul.f32 %v330, %v426
        %v469 = vmul.f32 %v331, %v427
        %v470 = vmul.f32 %v332, %v428
        %v471 = vlaneseq
        %v472 = vshrl.u32 %v471, 7
        %v473 = vsub.s32 1, %v472
        %v474 = vrot.slane %v429, %v473
        %v475 = vmul.f32 %v463, %v474
        %v476 = vmul.f32 %v464, %v474
        %v477 = vmul.f32 %v465, %v474
        %v478 = vmul.f32 %v466, %v474
        %v479 = vmul.f32 %v467, %v474
        %v480 = vmul.f32 %v468, %v474
        %v481 = vmul.f32 %v469, %v474
        %v482 = vmul.f32 %v470, %v474
        %v483 = vlaneseq
        %v484 = vshrl.u32 %v483, 7
        %v485 = vsub.s32 1, %v484
        %v486 = vrot.slane %v430, %v485
        %v487 = vadd.f32 %v475, %v486
        %v488 = vadd.f32 %v476, %v486
        %v489 = vadd.f32 %v477, %v486
        %v490 = vadd.f32 %v478, %v486
        %v491 = vadd.f32 %v479, %v486
        %v492 = vadd.f32 %v480, %v486
        %v493 = vadd.f32 %v481, %v486
        %v494 = vadd.f32 %v482, %v486
        %v495 = vld [vmem:[#allocation4] sm:$0xff]
        %v496 = vld [vmem:[#allocation4 + $0x8] sm:$0xff]
        %v497 = vld [vmem:[#allocation4 + $0x10] sm:$0xff]
        %v498 = vld [vmem:[#allocation4 + $0x18] sm:$0xff]
        %v499 = vld [vmem:[#allocation4 + $0x20] sm:$0xff]
        %v500 = vld [vmem:[#allocation4 + $0x28] sm:$0xff]
        %v501 = vld [vmem:[#allocation4 + $0x30] sm:$0xff]
        %v502 = vld [vmem:[#allocation4 + $0x38] sm:$0xff]
        %s503 = scalar_lea.vmem [#allocation4], 64
        %v504 = vld [vmem:[%s503] sm:$0xff]
        %v505 = vld [vmem:[%s503 + $0x8] sm:$0xff]
        %v506 = vld [vmem:[%s503 + $0x10] sm:$0xff]
        %v507 = vld [vmem:[%s503 + $0x18] sm:$0xff]
        %v508 = vld [vmem:[%s503 + $0x20] sm:$0xff]
        %v509 = vld [vmem:[%s503 + $0x28] sm:$0xff]
        %v510 = vld [vmem:[%s503 + $0x30] sm:$0xff]
        %v511 = vld [vmem:[%s503 + $0x38] sm:$0xff]
        %v513 = vsel %vm252, %v487, 0
        %v516 = vsel %vm252, %v488, 0
        %v519 = vsel %vm252, %v489, 0
        %v522 = vsel %vm252, %v490, 0
        %v525 = vsel %vm252, %v491, 0
        %v528 = vsel %vm252, %v492, 0
        %v531 = vsel %vm252, %v493, 0
        %v534 = vsel %vm252, %v494, 0
        %536 = vmatprep.subr.mxu0 0.0
        %537 = vmatpush1.msra.mxu0 %v504
        %538 = vmatprep.subr.mxu0 0.0
        %539 = vmatpush1.msra.mxu0 %v505
        %540 = vmatprep.subr.mxu0 0.0
        %541 = vmatpush1.msra.mxu0 %v506
        %542 = vmatprep.subr.mxu0 0.0
        %543 = vmatpush1.msra.mxu0 %v507
        %544 = vmatprep.subr.mxu0 0.0
        %545 = vmatpush1.msra.mxu0 %v508
        %546 = vmatprep.subr.mxu0 0.0
        %547 = vmatpush1.msra.mxu0 %v509
        %548 = vmatprep.subr.mxu0 0.0
        %549 = vmatpush1.msra.mxu0 %v510
        %550 = vmatprep.subr.mxu0 0.0
        %551 = vmatpush1.msra.mxu0 %v511
        %552 = vmatprep.subr.mxu0 0.0
        %553 = vmatpush1.msra.mxu0 0.0
        %554 = vmatprep.subr.mxu0 0.0
        %555 = vmatpush1.msra.mxu0 0.0
        %556 = vmatprep.subr.mxu0 0.0
        %557 = vmatpush1.msra.mxu0 0.0
        %558 = vmatprep.subr.mxu0 0.0
        %559 = vmatpush1.msra.mxu0 0.0
        %560 = vmatprep.subr.mxu0 0.0
        %561 = vmatpush1.msra.mxu0 0.0
        %562 = vmatprep.subr.mxu0 0.0
        %563 = vmatpush1.msra.mxu0 0.0
        %564 = vmatprep.subr.mxu0 0.0
        %565 = vmatpush1.msra.mxu0 0.0
        %566 = vmatprep.subr.mxu0 0.0
        %567 = vmatpush1.msra.mxu0 0.0
        %568 = vmatprep.subr.mxu0 0.0
        %569 = vmatpush1.msra.mxu0 0.0
        %570 = vmatprep.subr.mxu0 0.0
        %571 = vmatpush1.msra.mxu0 0.0
        %572 = vmatprep.subr.mxu0 0.0
        %573 = vmatpush1.msra.mxu0 0.0
        %574 = vmatprep.subr.mxu0 0.0
        %575 = vmatpush1.msra.mxu0 0.0
        %576 = vmatprep.subr.mxu0 0.0
        %577 = vmatpush1.msra.mxu0 0.0
        %578 = vmatprep.subr.mxu0 0.0
        %579 = vmatpush1.msra.mxu0 0.0
        %580 = vmatprep.subr.mxu0 0.0
        %581 = vmatpush1.msra.mxu0 0.0
        %582 = vmatprep.subr.mxu0 0.0
        %583 = vmatpush1.msra.mxu0 0.0
        %584 = vmatprep.subr.mxu0 0.0
        %585 = vmatpush1.msra.mxu0 0.0
        %586 = vmatprep.subr.mxu0 0.0
        %587 = vmatpush1.msra.mxu0 0.0
        %588 = vmatprep.subr.mxu0 0.0
        %589 = vmatpush1.msra.mxu0 0.0
        %590 = vmatprep.subr.mxu0 0.0
        %591 = vmatpush1.msra.mxu0 0.0
        %592 = vmatprep.subr.mxu0 0.0
        %593 = vmatpush1.msra.mxu0 0.0
        %594 = vmatprep.subr.mxu0 0.0
        %595 = vmatpush1.msra.mxu0 0.0
        %596 = vmatprep.subr.mxu0 0.0
        %597 = vmatpush1.msra.mxu0 0.0
        %598 = vmatprep.subr.mxu0 0.0
        %599 = vmatpush1.msra.mxu0 0.0
        %600 = vmatprep.mubr.f32.mxu0 0.0
        %601 = vmatmul.mubr.f32.gmra.mrb[0].mxu0 %v513
        %v602 = vpop.f32.mrb[0].mxu0
        %v603 = vadd.f32 0.0, %v602
        %v604 = vpop.f32.mrb[0].mxu0
        %605 = vmatprep.mubr.f32.mxu0 0.0
        %606 = vmatmul.mubr.f32.gmra.mrb[0].mxu0 %v516
        %v607 = vpop.f32.mrb[0].mxu0
        %v608 = vadd.f32 0.0, %v607
        %v609 = vpop.f32.mrb[0].mxu0
        %610 = vmatprep.mubr.f32.mxu0 0.0
        %611 = vmatmul.mubr.f32.gmra.mrb[0].mxu0 %v519
        %v612 = vpop.f32.mrb[0].mxu0
        %v613 = vadd.f32 0.0, %v612
        %v614 = vpop.f32.mrb[0].mxu0
        %615 = vmatprep.mubr.f32.mxu0 0.0
        %616 = vmatmul.mubr.f32.gmra.mrb[0].mxu0 %v522
        %v617 = vpop.f32.mrb[0].mxu0
        %v618 = vadd.f32 0.0, %v617
        %v619 = vpop.f32.mrb[0].mxu0
        %620 = vmatprep.mubr.f32.mxu0 0.0
        %621 = vmatmul.mubr.f32.gmra.mrb[0].mxu0 %v525
        %v622 = vpop.f32.mrb[0].mxu0
        %v623 = vadd.f32 0.0, %v622
        %v624 = vpop.f32.mrb[0].mxu0
        %625 = vmatprep.mubr.f32.mxu0 0.0
        %626 = vmatmul.mubr.f32.gmra.mrb[0].mxu0 %v528
        %v627 = vpop.f32.mrb[0].mxu0
        %v628 = vadd.f32 0.0, %v627
        %v629 = vpop.f32.mrb[0].mxu0
        %630 = vmatprep.mubr.f32.mxu0 0.0
        %631 = vmatmul.mubr.f32.gmra.mrb[0].mxu0 %v531
        %v632 = vpop.f32.mrb[0].mxu0
        %v633 = vadd.f32 0.0, %v632
        %v634 = vpop.f32.mrb[0].mxu0
        %635 = vmatprep.mubr.f32.mxu0 0.0
        %636 = vmatmul.mubr.f32.gmra.mrb[0].mxu0 %v534
        %v637 = vpop.f32.mrb[0].mxu0
        %v638 = vadd.f32 0.0, %v637
        %v639 = vpop.f32.mrb[0].mxu0
        %640 = vdwg.mxu0
        %v642 = vsel %vm252, %v455, 0
        %v645 = vsel %vm252, %v456, 0
        %v648 = vsel %vm252, %v457, 0
        %v651 = vsel %vm252, %v458, 0
        %v654 = vsel %vm252, %v459, 0
        %v657 = vsel %vm252, %v460, 0
        %v660 = vsel %vm252, %v461, 0
        %v663 = vsel %vm252, %v462, 0
        %665 = vmatprep.subr.mxu0 0.0
        %666 = vmatpush1.msra.mxu0 %v495
        %667 = vmatprep.subr.mxu0 0.0
        %668 = vmatpush1.msra.mxu0 %v496
        %669 = vmatprep.subr.mxu0 0.0
        %670 = vmatpush1.msra.mxu0 %v497
        %671 = vmatprep.subr.mxu0 0.0
        %672 = vmatpush1.msra.mxu0 %v498
        %673 = vmatprep.subr.mxu0 0.0
        %674 = vmatpush1.msra.mxu0 %v499
        %675 = vmatprep.subr.mxu0 0.0
        %676 = vmatpush1.msra.mxu0 %v500
        %677 = vmatprep.subr.mxu0 0.0
        %678 = vmatpush1.msra.mxu0 %v501
        %679 = vmatprep.subr.mxu0 0.0
        %680 = vmatpush1.msra.mxu0 %v502
        %681 = vmatprep.subr.mxu0 0.0
        %682 = vmatpush1.msra.mxu0 0.0
        %683 = vmatprep.subr.mxu0 0.0
        %684 = vmatpush1.msra.mxu0 0.0
        %685 = vmatprep.subr.mxu0 0.0
        %686 = vmatpush1.msra.mxu0 0.0
        %687 = vmatprep.subr.mxu0 0.0
        %688 = vmatpush1.msra.mxu0 0.0
        %689 = vmatprep.subr.mxu0 0.0
        %690 = vmatpush1.msra.mxu0 0.0
        %691 = vmatprep.subr.mxu0 0.0
        %692 = vmatpush1.msra.mxu0 0.0
        %693 = vmatprep.subr.mxu0 0.0
        %694 = vmatpush1.msra.mxu0 0.0
        %695 = vmatprep.subr.mxu0 0.0
        %696 = vmatpush1.msra.mxu0 0.0
        %697 = vmatprep.subr.mxu0 0.0
        %698 = vmatpush1.msra.mxu0 0.0
        %699 = vmatprep.subr.mxu0 0.0
        %700 = vmatpush1.msra.mxu0 0.0
        %701 = vmatprep.subr.mxu0 0.0
        %702 = vmatpush1.msra.mxu0 0.0
        %703 = vmatprep.subr.mxu0 0.0
        %704 = vmatpush1.msra.mxu0 0.0
        %705 = vmatprep.subr.mxu0 0.0
        %706 = vmatpush1.msra.mxu0 0.0
        %707 = vmatprep.subr.mxu0 0.0
        %708 = vmatpush1.msra.mxu0 0.0
        %709 = vmatprep.subr.mxu0 0.0
        %710 = vmatpush1.msra.mxu0 0.0
        %711 = vmatprep.subr.mxu0 0.0
        %712 = vmatpush1.msra.mxu0 0.0
        %713 = vmatprep.subr.mxu0 0.0
        %714 = vmatpush1.msra.mxu0 0.0
        %715 = vmatprep.subr.mxu0 0.0
        %716 = vmatpush1.msra.mxu0 0.0
        %717 = vmatprep.subr.mxu0 0.0
        %718 = vmatpush1.msra.mxu0 0.0
        %719 = vmatprep.subr.mxu0 0.0
        %720 = vmatpush1.msra.mxu0 0.0
        %721 = vmatprep.subr.mxu0 0.0
        %722 = vmatpush1.msra.mxu0 0.0
        %723 = vmatprep.subr.mxu0 0.0
        %724 = vmatpush1.msra.mxu0 0.0
        %725 = vmatprep.subr.mxu0 0.0
        %726 = vmatpush1.msra.mxu0 0.0
        %727 = vmatprep.subr.mxu0 0.0
        %728 = vmatpush1.msra.mxu0 0.0
        %729 = vmatprep.mubr.f32.mxu0 0.0
        %730 = vmatmul.mubr.f32.gmra.mrb[0].mxu0 %v642
        %v731 = vpop.f32.mrb[0].mxu0
        %v732 = vadd.f32 %v603, %v731
        %v733 = vpop.f32.mrb[0].mxu0
        %734 = vmatprep.mubr.f32.mxu0 0.0
        %735 = vmatmul.mubr.f32.gmra.mrb[0].mxu0 %v645
        %v736 = vpop.f32.mrb[0].mxu0
        %v737 = vadd.f32 %v608, %v736
        %v738 = vpop.f32.mrb[0].mxu0
        %739 = vmatprep.mubr.f32.mxu0 0.0
        %740 = vmatmul.mubr.f32.gmra.mrb[0].mxu0 %v648
        %v741 = vpop.f32.mrb[0].mxu0
        %v742 = vadd.f32 %v613, %v741
        %v743 = vpop.f32.mrb[0].mxu0
        %744 = vmatprep.mubr.f32.mxu0 0.0
        %745 = vmatmul.mubr.f32.gmra.mrb[0].mxu0 %v651
        %v746 = vpop.f32.mrb[0].mxu0
        %v747 = vadd.f32 %v618, %v746
        %v748 = vpop.f32.mrb[0].mxu0
        %749 = vmatprep.mubr.f32.mxu0 0.0
        %750 = vmatmul.mubr.f32.gmra.mrb[0].mxu0 %v654
        %v751 = vpop.f32.mrb[0].mxu0
        %v752 = vadd.f32 %v623, %v751
        %v753 = vpop.f32.mrb[0].mxu0
        %754 = vmatprep.mubr.f32.mxu0 0.0
        %755 = vmatmul.mubr.f32.gmra.mrb[0].mxu0 %v657
        %v756 = vpop.f32.mrb[0].mxu0
        %v757 = vadd.f32 %v628, %v756
        %v758 = vpop.f32.mrb[0].mxu0
        %759 = vmatprep.mubr.f32.mxu0 0.0
        %760 = vmatmul.mubr.f32.gmra.mrb[0].mxu0 %v660
        %v761 = vpop.f32.mrb[0].mxu0
        %v762 = vadd.f32 %v633, %v761
        %v763 = vpop.f32.mrb[0].mxu0
        %764 = vmatprep.mubr.f32.mxu0 0.0
        %765 = vmatmul.mubr.f32.gmra.mrb[0].mxu0 %v663
        %v766 = vpop.f32.mrb[0].mxu0
        %v767 = vadd.f32 %v638, %v766
        %v768 = vpop.f32.mrb[0].mxu0
        %769 = vdwg.mxu0
        %770 = vst.msk [vmem:[%s234] sm:$0xff] %vm252, %v732
        %771 = vst.msk [vmem:[%s234 + $0x8] sm:$0xff] %vm252, %v737
        %772 = vst.msk [vmem:[%s234 + $0x10] sm:$0xff] %vm252, %v742
        %773 = vst.msk [vmem:[%s234 + $0x18] sm:$0xff] %vm252, %v747
        %774 = vst.msk [vmem:[%s234 + $0x20] sm:$0xff] %vm252, %v752
        %775 = vst.msk [vmem:[%s234 + $0x28] sm:$0xff] %vm252, %v757
        %776 = vst.msk [vmem:[%s234 + $0x30] sm:$0xff] %vm252, %v762
        %777 = vst.msk [vmem:[%s234 + $0x38] sm:$0xff] %vm252, %v767
        %s778 = smul.u32 8, %s19
        %p779 = scmp.lt.s32.totalorder %s778, 15
        %s780 = scalar_select %p779, %s778, 15
        %s781 = smul.addr %s780, 8
        %s782 = scalar_lea.vmem %s4, %s781
        // Predicated region
        $region45: #{tpu_custom_call.1} parent=35 // pred_check
          %p783 = pneg %p126
        $region46: #{tpu_custom_call.1} parent=35 // pred_check_branch
          %785 = sbr.rel (%p783) target = $region48
        $region47: #{tpu_custom_call.1} parent=35 // pred_region
          %s786 = smul.u32 8, %s19
        $region48: #{tpu_custom_call.1} parent=35 // pred_fallthru
          _
      $region36: #{tpu_custom_call.1} parent=5 // pred_fallthru
        _
      %p787 = scmp.le.s32.totalorder 2, %s14
      // Predicated region
      $region49: #{tpu_custom_call.1} parent=5 // pred_check
        %p788 = pneg %p787
      $region50: #{tpu_custom_call.1} parent=5 // pred_check_branch
        %790 = sbr.rel (%p788) target = $region52
      $region51: #{tpu_custom_call.1} parent=5 // pred_region
        %s791 = ssub.s32 %s14, 2
        // Predicated region
        $region53: #{tpu_custom_call.1} parent=51 // pred_check
          %p792 = pneg %p132
        $region54: #{tpu_custom_call.1} parent=51 // pred_check_branch
          %794 = sbr.rel (%p792) target = $region56
        $region55: #{tpu_custom_call.1} parent=51 // pred_region
          %s795 = smul.u32 8, %s20
          %p796 = scmp.lt.s32.totalorder %s795, 15
          %s797 = scalar_select %p796, %s795, 15
          %s798 = smul.addr %s797, 8
          %s799 = scalar_lea.vmem %s4, %s798
        $region56: #{tpu_custom_call.1} parent=51 // pred_fallthru
          _
      $region52: #{tpu_custom_call.1} parent=5 // pred_fallthru
        _
    $region6: #{tpu_custom_call.1} parent=1 // loop_footer
      %s18 = sadd.s32 1, %s14
    $region7: #{tpu_custom_call.1} parent=1 // loop_footer_branch
      %13 = sbr.rel target = $region3
    $region8: #{tpu_custom_call.1} parent=1 // loop_exit
      _
    %800 = vsyncpa [#allocation3], 1
    %s801 = scalar_lea.sflag [#allocation3], 1
    %802 = vsyncpa %s801, 1
    %803 = vsyncpa [#allocation5], 1

</llo_original>
